<compile_context>
chip_gen: v5e
topology: v5e:2x2
jax: 0.10.0
libtpu: 0.0.40
codegen_flags: <defaults>
</compile_context>

<pallas_src>
import jax
import jax.numpy as jnp
from jax.experimental import pallas as pl
from jax.experimental.pallas import tpu as pltpu


def _normalize_kernel(mean_ref, std_ref, x_ref, o_ref):
    # mean_ref / std_ref: (TR, 1) f32 columns -> free lane broadcast on the VPU.
    # x_ref / o_ref:      (TR, TL) tiles in VMEM.
    o_ref[...] = ((x_ref[...] - mean_ref[...]) / std_ref[...]).astype(o_ref.dtype)


def _choose_tiles(R, L, itemsize, max_block_bytes=2 * 1024 * 1024):
    """Pick (TR, TL) for the flattened (R, L) problem.

    TL: lane-dense (multiple of 128) chunk of L, or the full dim if L is
        ragged (full-dim blocks are exempt from the (8,128) rule).
    TR: multiple of 8 sized so one block stays under `max_block_bytes`
        (double-buffered in + out = 4 x block must fit scoped VMEM on every
        generation: 16 MiB v5e, 32 MiB v6e/v7x defaults).
    """
    if L % 128 == 0:
        TL = min(L, 2048)
    else:
        TL = L
    max_rows = max(8, (max_block_bytes // (TL * itemsize)) // 8 * 8)
    if R % 8 == 0:
        TR = min(R, max_rows)
    else:
        TR = R  # small ragged row count (N*C): take the full dim.
    return TR, TL


def kornia_transform(x, mean, std):
    """Pallas implementation of KorniaTransform.forward for a Normalize pipe."""
    N, C, H, W = x.shape
    R, L = N * C, H * W
    dtype = x.dtype
    itemsize = x.dtype.itemsize

    # Flatten to a lane-dense 2D problem: rows = (n, c) pairs, lanes = pixels.
    x2 = x.reshape(R, L)
    mean_rows = jnp.tile(mean.astype(jnp.float32), N).reshape(R, 1)
    std_rows = jnp.tile(std.astype(jnp.float32), N).reshape(R, 1)

    TR, TL = _choose_tiles(R, L, itemsize)
    grid = (pl.cdiv(R, TR), pl.cdiv(L, TL))

    out = pl.pallas_call(
        _normalize_kernel,
        out_shape=jax.ShapeDtypeStruct((R, L), dtype),
        grid=grid,
        in_specs=[
            pl.BlockSpec((TR, 1), lambda i, j: (i, 0)),    # mean column (VMEM)
            pl.BlockSpec((TR, 1), lambda i, j: (i, 0)),    # std  column (VMEM)
            pl.BlockSpec((TR, TL), lambda i, j: (i, j)),   # x tile
        ],
        out_specs=pl.BlockSpec((TR, TL), lambda i, j: (i, j)),
        compiler_params=pltpu.CompilerParams(
            dimension_semantics=("parallel", "parallel")),
        cost_estimate=pl.CostEstimate(
            flops=2 * R * L,
            transcendentals=0,
            bytes_accessed=2 * R * L * itemsize + 2 * R * 4),
    )(mean_rows, std_rows, x2)

    # matches `x = x.squeeze()` in the PyTorch forward (drops ALL size-1 dims).
    return jnp.squeeze(out.reshape(N, C, H, W))


if __name__ == "__main__":
    key = jax.random.PRNGKey(0)
    N, C, H, W = 2, 4, 16, 16
    x = jax.random.uniform(key, (N, C, H, W), dtype=jnp.float32)

    # Deterministic per-channel normalization parameters (synthetic, not a
    # checkpoint): imagenet-like values padded to C channels.
    mean = jnp.array([0.485, 0.456, 0.406, 0.5][:C], dtype=jnp.float32)
    std = jnp.array([0.229, 0.224, 0.225, 0.25][:C], dtype=jnp.float32)

    y = jax.block_until_ready(kornia_transform(x, mean, std))

    # Reference check in plain JAX.
    ref = jnp.squeeze((x - mean[None, :, None, None]) / std[None, :, None, None])
    assert y.shape == ref.shape, (y.shape, ref.shape)
    assert jnp.allclose(y, ref, atol=1e-5, rtol=1e-5)

    print("KERNEL_OK")
</pallas_src>

<mosaic_0001>
module attributes {stable_mosaic.version = 11 : i64} {
  func.func @_normalize_kernel(%arg0: i32, %arg1: i32, %arg2: memref<8x1xf32, #tpu.memory_space<vmem>>, %arg3: memref<8x1xf32, #tpu.memory_space<vmem>>, %arg4: memref<8x256xf32, #tpu.memory_space<vmem>>, %arg5: memref<8x256xf32, #tpu.memory_space<vmem>>) attributes {dimension_semantics = [#tpu.dimension_semantics<parallel>, #tpu.dimension_semantics<parallel>], iteration_bounds = array<i64: 1, 1>, scalar_prefetch = 0 : i64, scratch_operands = 0 : i64, tpu.core_type = #tpu.core_type<tc>, window_params = [{transform_indices = @transform_0, window_bounds = array<i64: 8, 1>}, {transform_indices = @transform_1, window_bounds = array<i64: 8, 1>}, {transform_indices = @transform_2, window_bounds = array<i64: 8, 256>}, {transform_indices = @transform_3, window_bounds = array<i64: 8, 256>}]} {
    %c0 = arith.constant 0 : index
    %c0_0 = arith.constant 0 : index
    %0 = vector.load %arg4[%c0, %c0_0] : memref<8x256xf32, #tpu.memory_space<vmem>>, vector<8x256xf32>
    %c0_1 = arith.constant 0 : index
    %c0_2 = arith.constant 0 : index
    %1 = vector.load %arg2[%c0_1, %c0_2] : memref<8x1xf32, #tpu.memory_space<vmem>>, vector<8x1xf32>
    %2 = vector.broadcast %1 : vector<8x1xf32> to vector<8x256xf32>
    %3 = arith.subf %0, %2 : vector<8x256xf32>
    %c0_3 = arith.constant 0 : index
    %c0_4 = arith.constant 0 : index
    %4 = vector.load %arg3[%c0_3, %c0_4] : memref<8x1xf32, #tpu.memory_space<vmem>>, vector<8x1xf32>
    %5 = vector.broadcast %4 : vector<8x1xf32> to vector<8x256xf32>
    %6 = arith.divf %3, %5 : vector<8x256xf32>
    %c0_5 = arith.constant 0 : index
    %c0_6 = arith.constant 0 : index
    %7 = vector.load %arg5[%c0_5, %c0_6] : memref<8x256xf32, #tpu.memory_space<vmem>>, vector<8x256xf32>
    tpu.vector_store %arg5[%c0_5, %c0_6], %6 {strides = array<i32>} : memref<8x256xf32, #tpu.memory_space<vmem>>, vector<8x256xf32>,
    return
  }
  func.func @transform_0(%arg0: i32, %arg1: i32) -> (i32, i32) {
    %c0_i32 = arith.constant 0 : i32
    %c0_i32_0 = arith.constant 0 : i32
    return %arg0, %c0_i32 : i32, i32
  }
  func.func @transform_1(%arg0: i32, %arg1: i32) -> (i32, i32) {
    %c0_i32 = arith.constant 0 : i32
    %c0_i32_0 = arith.constant 0 : i32
    return %arg0, %c0_i32 : i32, i32
  }
  func.func @transform_2(%arg0: i32, %arg1: i32) -> (i32, i32) {
    %c0_i32 = arith.constant 0 : i32
    return %arg0, %arg1 : i32, i32
  }
  func.func @transform_3(%arg0: i32, %arg1: i32) -> (i32, i32) {
    %c0_i32 = arith.constant 0 : i32
    return %arg0, %arg1 : i32, i32
  }
}

</mosaic_0001>

<llo_original>
// kernel: tpu_custom_call.1
$region0: #{tpu_custom_call.1}
  #allocation0 [shape = 'u32[]', space=smem, size = 0x4, offset = 0x4, fixed_abs, tag = 'smem constant byte address 0x4 - core index']
  #allocation1 [shape = 'u32[72,128]{1,0:T(1,128)}', space=vmem, size = 0x9000, scoped, tag = 'internal scratch']
  %s0 = inlined_call_operand.vmem [shape: f32[8,1], index: 0, kind: input, shape index: {}]
  %s1 = inlined_call_operand.vmem [shape: f32[8,1], index: 1, kind: input, shape index: {}]
  %s2 = inlined_call_operand.vmem [shape: f32[8,256], index: 2, kind: input, shape index: {}]
  %s3 = inlined_call_operand.hbm [shape: f32[8,256], index: 3, kind: output, shape index: {}]
  %s4 = sld [smem:[#allocation0]]
  $region22: #{tpu_custom_call.1} parent=0
    _
  %s6 = ssub.s32 1, %s4
  %s7 = scalar_select 0, %s6, %s4
  $region1: #{tpu_custom_call.1} parent=0
    #allocation2 [shape = 'u8[8192]{0}', space=vmem, size = 0x2000, scoped, tag = 'output window, operand 0, single buffered']
    #allocation3 [shape = 's32[1]{0}', space=sflag, size = 0x4, scoped, tag = 'scoped memory for tpu_custom_call.1']
    %8 = vsyncpa [#allocation3], 0
    // Predicated region
    $region2: #{tpu_custom_call.1} parent=1 // pred_check
      _
    $region3: #{tpu_custom_call.1} parent=1 // pred_check_branch
      %10 = sbr.rel (0) target = $region5
    $region4: #{tpu_custom_call.1} parent=1 // pred_region
      _
    $region5: #{tpu_custom_call.1} parent=1 // pred_fallthru
      _
    // Predicated region
    $region6: #{tpu_custom_call.1} parent=1 // pred_check
      _
    $region7: #{tpu_custom_call.1} parent=1 // pred_check_branch
      %12 = sbr.rel (0) target = $region9
    $region8: #{tpu_custom_call.1} parent=1 // pred_region
      _
    $region9: #{tpu_custom_call.1} parent=1 // pred_fallthru
      _
    // Predicated region
    $region10: #{tpu_custom_call.1} parent=1 // pred_check
      _
    $region11: #{tpu_custom_call.1} parent=1 // pred_check_branch
      %14 = sbr.rel (0) target = $region13
    $region12: #{tpu_custom_call.1} parent=1 // pred_region
      _
    $region13: #{tpu_custom_call.1} parent=1 // pred_fallthru
      _
    %v15 = vld [vmem:[%s2] sm:$0xff]
    %v16 = vld [vmem:[%s2 + $0x8] sm:$0xff]
    %v17 = vld [vmem:[%s0] sm:$0xff]
    %19 = vset.pattern.permute.xlu0 0
    %20 = vperm.xlu0 %19, %v17
    %v21 = vpop.permute.xlu0 %20
    %v23 = vsub.f32 %v15, %v21
    %v24 = vsub.f32 %v16, %v21
    %v25 = vld [vmem:[%s1] sm:$0xff]
    %27 = vset.pattern.permute.xlu0 0
    %28 = vperm.xlu0 %27, %v25
    %v29 = vpop.permute.xlu0 %28
    %v31 = vrcp.pop %v29
    %v32 = vmul.f32 %v29, %v31
    %v33 = vsub.f32 1.0, %v32
    %v34 = vmul.f32 %v31, %v33
    %v35 = vadd.f32 %v31, %v34
    %vm36 = vweird.f32 %v29
    %vm37 = vweird.f32 %v31
    %vm38 = vmor %vm36, %vm37
    %v39 = vsel %vm38, %v31, %v35
    %v40 = vand.u32 2147483647, %v29
    %vm41 = vcmp.eq.f32.partialorder %v40, 8.507059e+37
    %v42 = vand.u32 %v29, 2147483648
    %v43 = vor.u32 1.1754944e-38, %v42
    %v44 = vsel %vm41, %v43, %v39
    %v45 = vmul.f32 %v23, %v44
    %v46 = vmul.f32 %v24, %v44
    %47 = vst [vmem:[#allocation2] sm:$0xff] %v45
    %48 = vst [vmem:[#allocation2 + $0x8] sm:$0xff] %v46
    // Predicated region
    $region14: #{tpu_custom_call.1} parent=1 // pred_check
      _
    $region15: #{tpu_custom_call.1} parent=1 // pred_check_branch
      %50 = sbr.rel (0) target = $region17
    $region16: #{tpu_custom_call.1} parent=1 // pred_region
      %52 = vsyncadd [#allocation3], 0
      %s54 = sshll.u32 [#allocation2], 4
      %s55 = int_to_ptr.vmem [resolvable:$true] %s54
      %s56 = sshll.u32 %s3, 4
      %s57 = int_to_ptr.hbm [resolvable:$true] %s56
      %59 = dma.vmem_to_hbm [thread:$0]  %s55, 256, %s57, [#allocation3]
    $region17: #{tpu_custom_call.1} parent=1 // pred_fallthru
      _
    // Predicated region
    $region18: #{tpu_custom_call.1} parent=1 // pred_check
      _
    $region19: #{tpu_custom_call.1} parent=1 // pred_check_branch
      %61 = sbr.rel (0) target = $region21
    $region20: #{tpu_custom_call.1} parent=1 // pred_region
      %63 = dma.done [#allocation3], 256
    $region21: #{tpu_custom_call.1} parent=1 // pred_fallthru
      _
    %64 = vsyncpa [#allocation3], 1

</llo_original>
